<compile_context>
chip_gen: v7x
topology: tpu7x:2x2x1
jax: 0.10.0
libtpu: 0.0.40
codegen_flags: <defaults>
</compile_context>

<pallas_src>
import functools

import jax
import jax.numpy as jnp
from jax.experimental import pallas as pl
from jax.experimental.pallas import tpu as pltpu


_VMEM_TILE_BUDGET_BYTES = 8 * 1024 * 1024   # per-step working-set target
_MAX_ROW_TILE = 2048                        # beyond this, per-step overhead is negligible
_LANE = 128


def _sublane_multiple(dtype) -> int:
    itemsize = jnp.dtype(dtype).itemsize
    return {1: 32, 2: 16, 4: 8}.get(itemsize, 8)


def _pick_row_tile(rows: int, bytes_per_row: int, dtype) -> int:
    """Row tile from a VMEM byte budget; >=2 grid steps when rows allow (v7x)."""
    sub = _sublane_multiple(dtype)
    if rows <= sub:
        return rows                          # full-extent block is always legal
    tb = min(rows, _MAX_ROW_TILE,
             max(sub, _VMEM_TILE_BUDGET_BYTES // max(bytes_per_row, 1)))
    tb = max(sub, (tb // sub) * sub)
    # Make sure the "parallel" batch axis has >= 2 steps so both v7x
    # TensorCores get rows (no-op on single-core v5e / v6e).
    if pl.cdiv(rows, tb) == 1 and rows >= 2 * sub:
        tb = max(sub, (((rows + 1) // 2) // sub) * sub)
    return tb


# ----------------------------------------------------------------------------
# Kernel 1: concatenate per-camera embeddings along the last dim.
#   One (tb, D_c) input block per camera, one (tb, sum(D_c)) output block.
#   Each byte is read once and written once; all column offsets are 128-lane
#   aligned (guaranteed by the wrapper), so every store is an unmasked vst.
# ----------------------------------------------------------------------------
def _concat_cams_kernel(*refs):
    *emb_refs, out_ref = refs
    off = 0
    for e_ref in emb_refs:
        d = e_ref.shape[-1]
        out_ref[:, off:off + d] = e_ref[...]     # static, lane-aligned column slice
        off += d


def concat_camera_embeddings(camera_embeddings) -> jax.Array:
    """[(..., D_0), (..., D_1), ...] -> (..., D_0 + D_1 + ...)."""
    embs = [jnp.asarray(e) for e in camera_embeddings]
    if len(embs) == 1:
        return embs[0]
    dtype = embs[0].dtype
    assert all(e.dtype == dtype for e in embs), "camera embeddings must share dtype"
    lead = embs[0].shape[:-1]
    dims = [int(e.shape[-1]) for e in embs]
    total = sum(dims)

    rows = 1
    for s in lead:
        rows *= int(s)

    # Lane alignment check: every cumulative column offset must be a multiple
    # of 128, otherwise masked stores + XLU shuffles would dominate — in that
    # case let XLA fuse a plain concatenate instead (also avoids the extra
    # HBM round-trip of a standalone custom call).
    aligned = all(d % _LANE == 0 for d in dims[:-1])
    if not aligned or rows == 0:
        return jnp.concatenate(embs, axis=-1)

    embs2d = [e.reshape(rows, d) for e, d in zip(embs, dims)]
    itemsize = jnp.dtype(dtype).itemsize
    bytes_per_row = 2 * (2 * total * itemsize)   # (inputs + output) x double-buffer
    tb = _pick_row_tile(rows, bytes_per_row, dtype)

    out = pl.pallas_call(
        _concat_cams_kernel,
        out_shape=jax.ShapeDtypeStruct((rows, total), dtype),
        grid=(pl.cdiv(rows, tb),),
        in_specs=[pl.BlockSpec((tb, d), lambda i: (i, 0)) for d in dims],
        out_specs=pl.BlockSpec((tb, total), lambda i: (i, 0)),
        compiler_params=pltpu.CompilerParams(
            dimension_semantics=("parallel",)),
    )(*embs2d)
    return out.reshape(*lead, total)


# ----------------------------------------------------------------------------
# Kernel 2: add Gaussian noise to the (x, y[, z]) coordinate thirds.
#   Noise is pre-generated (and pre-scaled) in f32 by the wrapper; the kernel
#   is a fused streaming add with a lane-dense output store.
# ----------------------------------------------------------------------------
def _add_noise_full_kernel(coords_ref, noise_ref, out_ref):
    x = coords_ref[...].astype(jnp.float32)
    out_ref[...] = (x + noise_ref[...]).astype(out_ref.dtype)


def _add_noise_skipz_kernel(coords_ref, noise_ref, out_ref, *, noisy_cols):
    xy = coords_ref[:, :noisy_cols].astype(jnp.float32)
    out_ref[:, :noisy_cols] = (xy + noise_ref[...]).astype(out_ref.dtype)
    out_ref[:, noisy_cols:] = coords_ref[:, noisy_cols:]   # z third untouched


def add_gaussian_noise(coordinates: jax.Array,
                       noise_scale,
                       key: jax.Array,
                       skip_z: bool = False,
                       donate_coordinates: bool = False) -> jax.Array:
    """Semantics of RepresentationLearner.add_gaussian_noise on (..., 3K) coords."""
    coordinates = jnp.asarray(coordinates)
    *lead, d3 = coordinates.shape
    assert d3 % 3 == 0, "coordinate dim must be divisible by 3 (x, y, z chunks)"
    k = d3 // 3
    dtype = coordinates.dtype

    rows = 1
    for s in lead:
        rows *= int(s)
    coords2d = coordinates.reshape(rows, d3)

    # Lane-dense fast path: only draw noise for the x/y thirds when the z
    # column offset (2K) is 128-aligned.  Otherwise draw full-width noise and
    # zero its z third in the wrapper (same semantics as torch's
    # `noise[..., 2] = 0`) so the kernel keeps a single full-width store.
    sliced = skip_z and (2 * k) % _LANE == 0
    noisy_cols = 2 * k if sliced else d3
    noise = jnp.asarray(noise_scale, jnp.float32) * jax.random.normal(
        key, (rows, noisy_cols), dtype=jnp.float32)
    if skip_z and not sliced:
        col = jax.lax.broadcasted_iota(jnp.int32, (rows, d3), 1)
        noise = jnp.where(col < 2 * k, noise, 0.0)

    itemsize = jnp.dtype(dtype).itemsize
    bytes_per_row = 2 * (2 * d3 * itemsize + 4 * noisy_cols)   # double-buffered
    tb = _pick_row_tile(rows, bytes_per_row, dtype)

    kernel = (functools.partial(_add_noise_skipz_kernel, noisy_cols=noisy_cols)
              if sliced else _add_noise_full_kernel)

    out = pl.pallas_call(
        kernel,
        out_shape=jax.ShapeDtypeStruct((rows, d3), dtype),
        grid=(pl.cdiv(rows, tb),),
        in_specs=[pl.BlockSpec((tb, d3), lambda i: (i, 0)),
                  pl.BlockSpec((tb, noisy_cols), lambda i: (i, 0))],
        out_specs=pl.BlockSpec((tb, d3), lambda i: (i, 0)),
        compiler_params=pltpu.CompilerParams(
            dimension_semantics=("parallel",)),
        input_output_aliases={0: 0} if donate_coordinates else {},
    )(coords2d, noise)
    return out.reshape(*lead, d3)


# ----------------------------------------------------------------------------
# JAX port of the module (glue around the kernels).
# ----------------------------------------------------------------------------
class RepresentationLearner:
    sample_type = None
    embedding_name = "descriptor"

    def __init__(self, config):
        self.disk_read_embedding = config.get("obs_config", {}).get(
            "disk_read_embedding", False)

    def forward(self, batch, **kwargs):
        return self.encode(batch)

    def encode(self, batch):
        camera_info = {}
        camera_embeddings = []
        for cam, obs in zip(batch["camera_names"], batch["camera_obs"]):
            if self.disk_read_embedding:
                emb = obs[self.embedding_name]
                info = {}
            else:
                emb, info = self.encode_single_camera(obs)
            camera_embeddings.append(emb)
            camera_info[cam] = info
        return concat_camera_embeddings(camera_embeddings), camera_info

    def encode_single_camera(self, obs):
        # TODO(synk): abstract in the PyTorch module (no concrete per-camera
        # encoder in the base class); only the disk_read_embedding path has
        # concrete compute.
        raise NotImplementedError

    @staticmethod
    def add_gaussian_noise(coordinates, noise_scale, key, skip_z=False):
        return add_gaussian_noise(coordinates, noise_scale, key, skip_z=skip_z)

    def reset_episode(self):
        pass

    # TODO(synk): update_params / evaluate / reconstruct / from_disk / to_disk
    # are abstract or pure-IO/training utilities with no Pallas equivalent.


if __name__ == "__main__":
    key = jax.random.PRNGKey(0)
    k1, k2, k3, k4, k5, k6, k7 = jax.random.split(key, 7)

    # --- encode(): lane-aligned per-camera dims -> Pallas concat kernel. -----
    B, D, num_cams = 8, 128, 2
    emb_wrist = jax.random.normal(k1, (B, D), dtype=jnp.float32)
    emb_overhead = jax.random.normal(k2, (B, D), dtype=jnp.float32)
    batch = {
        "camera_names": ("wrist", "overhead"),
        "camera_obs": ({"descriptor": emb_wrist}, {"descriptor": emb_overhead}),
    }
    model = RepresentationLearner({"obs_config": {"disk_read_embedding": True}})
    embedding, info = model.forward(batch)
    embedding = jax.block_until_ready(embedding)
    ref = jnp.concatenate([emb_wrist, emb_overhead], axis=-1)
    assert embedding.shape == (B, num_cams * D), embedding.shape
    assert jnp.allclose(embedding, ref), "concat kernel mismatch"
    assert set(info.keys()) == {"wrist", "overhead"}

    # --- encode(): lane-misaligned dims -> fused XLA concatenate fallback. ---
    emb_a = jax.random.normal(k3, (B, 96), dtype=jnp.float32)
    emb_b = jax.random.normal(k4, (B, 64), dtype=jnp.float32)
    out_misaligned = jax.block_until_ready(
        concat_camera_embeddings([emb_a, emb_b]))
    assert jnp.allclose(out_misaligned,
                        jnp.concatenate([emb_a, emb_b], axis=-1))

    # --- add_gaussian_noise: skip_z with lane-aligned K (sliced kernel). -----
    K = 128
    coords = jax.random.normal(k5, (B, 3 * K), dtype=jnp.float32)
    aug = jax.block_until_ready(
        RepresentationLearner.add_gaussian_noise(coords, 0.01, k6, skip_z=True))
    assert aug.shape == coords.shape
    assert jnp.allclose(aug[:, 2 * K:], coords[:, 2 * K:])       # z untouched
    assert not jnp.allclose(aug[:, :2 * K], coords[:, :2 * K])   # x/y perturbed
    delta = aug[:, :2 * K] - coords[:, :2 * K]
    assert float(jnp.max(jnp.abs(delta))) < 0.1, "noise scale off"

    # --- add_gaussian_noise: all thirds perturbed (full-width kernel). -------
    aug_full = jax.block_until_ready(
        RepresentationLearner.add_gaussian_noise(coords, 0.01, k7, skip_z=False))
    assert not jnp.allclose(aug_full[:, 2 * K:], coords[:, 2 * K:])

    # --- add_gaussian_noise: skip_z with non-aligned K (masked-noise path). --
    Ks = 96   # 2*Ks = 192 is not a multiple of 128 -> full-width noise, z zeroed
    coords_s = jax.random.normal(k5, (B, 3 * Ks), dtype=jnp.float32)
    aug_s = jax.block_until_ready(
        RepresentationLearner.add_gaussian_noise(coords_s, 0.01, k6, skip_z=True))
    assert jnp.allclose(aug_s[:, 2 * Ks:], coords_s[:, 2 * Ks:])
    assert not jnp.allclose(aug_s[:, :2 * Ks], coords_s[:, :2 * Ks])

    print("KERNEL_OK")
</pallas_src>

<mosaic_0001>
module attributes {stable_mosaic.version = 11 : i64} {
  func.func @_concat_cams_kernel(%arg0: i32, %arg1: memref<8x128xf32, #tpu.memory_space<vmem>>, %arg2: memref<8x128xf32, #tpu.memory_space<vmem>>, %arg3: memref<8x256xf32, #tpu.memory_space<vmem>>) attributes {dimension_semantics = [#tpu.dimension_semantics<parallel>], iteration_bounds = array<i64: 1>, scalar_prefetch = 0 : i64, scratch_operands = 0 : i64, tpu.core_type = #tpu.core_type<tc>, window_params = [{transform_indices = @transform_0, window_bounds = array<i64: 8, 128>}, {transform_indices = @transform_1, window_bounds = array<i64: 8, 128>}, {transform_indices = @transform_2, window_bounds = array<i64: 8, 256>}]} {
    %c0 = arith.constant 0 : index
    %c0_0 = arith.constant 0 : index
    %0 = vector.load %arg1[%c0, %c0_0] : memref<8x128xf32, #tpu.memory_space<vmem>>, vector<8x128xf32>
    %c0_1 = arith.constant 0 : index
    %c0_2 = arith.constant 0 : index
    %1 = vector.load %arg3[%c0_1, %c0_2] : memref<8x256xf32, #tpu.memory_space<vmem>>, vector<8x128xf32>
    tpu.vector_store %arg3[%c0_1, %c0_2], %0 {strides = array<i32>} : memref<8x256xf32, #tpu.memory_space<vmem>>, vector<8x128xf32>,
    %c0_3 = arith.constant 0 : index
    %c0_4 = arith.constant 0 : index
    %2 = vector.load %arg2[%c0_3, %c0_4] : memref<8x128xf32, #tpu.memory_space<vmem>>, vector<8x128xf32>
    %c0_5 = arith.constant 0 : index
    %c128 = arith.constant 128 : index
    %3 = vector.load %arg3[%c0_5, %c128] : memref<8x256xf32, #tpu.memory_space<vmem>>, vector<8x128xf32>
    tpu.vector_store %arg3[%c0_5, %c128], %2 {strides = array<i32>} : memref<8x256xf32, #tpu.memory_space<vmem>>, vector<8x128xf32>,
    return
  }
  func.func @transform_0(%arg0: i32) -> (i32, i32) {
    %c0_i32 = arith.constant 0 : i32
    %c0_i32_0 = arith.constant 0 : i32
    return %arg0, %c0_i32 : i32, i32
  }
  func.func @transform_1(%arg0: i32) -> (i32, i32) {
    %c0_i32 = arith.constant 0 : i32
    %c0_i32_0 = arith.constant 0 : i32
    return %arg0, %c0_i32 : i32, i32
  }
  func.func @transform_2(%arg0: i32) -> (i32, i32) {
    %c0_i32 = arith.constant 0 : i32
    %c0_i32_0 = arith.constant 0 : i32
    return %arg0, %c0_i32 : i32, i32
  }
}

</mosaic_0001>

<llo_original>
// kernel: tpu_custom_call.1
$region0: #{tpu_custom_call.1}
  #allocation0 [shape = 'u32[]', space=smem, size = 0x4, offset = 0x4, fixed_abs, tag = 'smem constant byte address 0x4 - core index']
  #allocation1 [shape = 'u32[144,128]{1,0:T(1,128)}', space=vmem, size = 0x12000, scoped, tag = 'internal scratch']
  %s0 = inlined_call_operand.hbm [shape: f32[8,128], index: 0, kind: input, shape index: {}]
  %s1 = inlined_call_operand.hbm [shape: f32[8,128], index: 1, kind: input, shape index: {}]
  %s2 = inlined_call_operand.hbm [shape: f32[8,256], index: 2, kind: output, shape index: {}]
  %s3 = sld [smem:[#allocation0]]
  $region26: #{tpu_custom_call.1} parent=0
    _
  %s5 = ssub.s32 1, %s3
  %s6 = scalar_select 0, %s5, %s3
  $region1: #{tpu_custom_call.1} parent=0
    #allocation2 [shape = 'u8[4096]{0}', space=vmem, size = 0x1000, scoped, tag = 'input window, operand 0, single buffered']
    #allocation3 [shape = 's32[1]{0}', space=sflag, size = 0x4, scoped, tag = 'scoped memory for tpu_custom_call.1']
    #allocation4 [shape = 's32[1]{0}', space=sflag, size = 0x4, scoped, tag = 'scoped memory for tpu_custom_call.1']
    #allocation5 [shape = 'u8[4096]{0}', space=vmem, size = 0x1000, scoped, tag = 'input window, operand 1, single buffered']
    #allocation6 [shape = 's32[1]{0}', space=sflag, size = 0x4, scoped, tag = 'scoped memory for tpu_custom_call.1']
    #allocation7 [shape = 'u8[8192]{0}', space=vmem, size = 0x2000, scoped, tag = 'output window, operand 0, single buffered']
    %7 = vsyncpa [#allocation3], 0
    %8 = vsyncpa [#allocation6], 0
    %9 = vsyncpa [#allocation4], 0
    // Predicated region
    $region2: #{tpu_custom_call.1} parent=1 // pred_check
      _
    $region3: #{tpu_custom_call.1} parent=1 // pred_check_branch
      %11 = sbr.rel (0) target = $region5
    $region4: #{tpu_custom_call.1} parent=1 // pred_region
      %s13 = ssub.s32 128, 128
      %14 = vsyncadd [#allocation3], %s13
      %s16 = sshll.u32 [#allocation2], 4
      %s17 = int_to_ptr.vmem [resolvable:$true] %s16
      %19 = dma.hbm_to_vmem [thread:$0]  %s0, 128, %s17, [#allocation3]
    $region5: #{tpu_custom_call.1} parent=1 // pred_fallthru
      _
    // Predicated region
    $region6: #{tpu_custom_call.1} parent=1 // pred_check
      _
    $region7: #{tpu_custom_call.1} parent=1 // pred_check_branch
      %21 = sbr.rel (0) target = $region9
    $region8: #{tpu_custom_call.1} parent=1 // pred_region
      %s23 = ssub.s32 128, 128
      %24 = vsyncadd [#allocation6], %s23
      %s26 = sshll.u32 [#allocation5], 4
      %s27 = int_to_ptr.vmem [resolvable:$true] %s26
      %29 = dma.hbm_to_vmem [thread:$0]  %s1, 128, %s27, [#allocation6]
    $region9: #{tpu_custom_call.1} parent=1 // pred_fallthru
      _
    // Predicated region
    $region10: #{tpu_custom_call.1} parent=1 // pred_check
      _
    $region11: #{tpu_custom_call.1} parent=1 // pred_check_branch
      %31 = sbr.rel (0) target = $region13
    $region12: #{tpu_custom_call.1} parent=1 // pred_region
      %32 = dma.done [#allocation3], 128
    $region13: #{tpu_custom_call.1} parent=1 // pred_fallthru
      _
    // Predicated region
    $region14: #{tpu_custom_call.1} parent=1 // pred_check
      _
    $region15: #{tpu_custom_call.1} parent=1 // pred_check_branch
      %34 = sbr.rel (0) target = $region17
    $region16: #{tpu_custom_call.1} parent=1 // pred_region
      %35 = dma.done [#allocation6], 128
    $region17: #{tpu_custom_call.1} parent=1 // pred_fallthru
      _
    %v36 = vld [vmem:[#allocation2] sm:$0xff]
    %37 = vst [vmem:[#allocation7] sm:$0xff] %v36
    %v38 = vld [vmem:[#allocation5] sm:$0xff]
    %39 = vst [vmem:[#allocation7 + $0x8] sm:$0xff] %v38
    // Predicated region
    $region18: #{tpu_custom_call.1} parent=1 // pred_check
      _
    $region19: #{tpu_custom_call.1} parent=1 // pred_check_branch
      %41 = sbr.rel (0) target = $region21
    $region20: #{tpu_custom_call.1} parent=1 // pred_region
      %s43 = ssub.s32 256, 256
      %44 = vsyncadd [#allocation4], %s43
      %s46 = sshll.u32 [#allocation7], 4
      %s47 = int_to_ptr.vmem [resolvable:$true] %s46
      %49 = dma.vmem_to_hbm [thread:$0]  %s47, 256, %s2, [#allocation4]
    $region21: #{tpu_custom_call.1} parent=1 // pred_fallthru
      _
    // Predicated region
    $region22: #{tpu_custom_call.1} parent=1 // pred_check
      _
    $region23: #{tpu_custom_call.1} parent=1 // pred_check_branch
      %51 = sbr.rel (0) target = $region25
    $region24: #{tpu_custom_call.1} parent=1 // pred_region
      %52 = dma.done [#allocation4], 256
    $region25: #{tpu_custom_call.1} parent=1 // pred_fallthru
      _
    %53 = vsyncpa [#allocation3], 1
    %54 = vsyncpa [#allocation6], 1
    %55 = vsyncpa [#allocation4], 1

</llo_original>
